<compile_context>
chip_gen: v7x
topology: tpu7x:2x2x1
jax: 0.10.0
libtpu: 0.0.40
codegen_flags: <defaults>
</compile_context>

<pallas_src>
import functools

import jax
import jax.numpy as jnp
from jax.experimental import pallas as pl
from jax.experimental.pallas import tpu as pltpu


def _regl1_kernel(feat_ref, ind_ref, mask_ref, target_ref, num_ref,
                  pred_acc, *, compute_dtype):
    h = pl.program_id(1)

    @pl.when(h == 0)
    def _():
        pred_acc[...] = jnp.zeros_like(pred_acc)

    hw_tile = feat_ref.shape[2]
    k = ind_ref.shape[2]

    idx = ind_ref[0]                                   # (1, K) int32
    local = idx - h * hw_tile                          # chunk-local index (1, K)

    # One-hot (transposed) selector for this HW chunk, built directly in the
    # compute dtype (0/1 are exact in bf16).
    pos = jax.lax.broadcasted_iota(jnp.int32, (hw_tile, k), 0)   # (HWt, K)
    onehot_t = (pos == local).astype(compute_dtype)              # (HWt, K)

    feat = feat_ref[0].astype(compute_dtype)                     # (C, HWt)
    # Each index hits exactly one chunk, so accumulating partial gathers over
    # chunks is numerically exact.
    pred_acc[...] += jnp.dot(feat, onehot_t,
                             preferred_element_type=jnp.float32)  # (C, K) f32

    @pl.when(h == pl.num_programs(1) - 1)
    def _():
        m = mask_ref[0].astype(jnp.float32)            # (1, K)
        tgt = target_ref[0].astype(jnp.float32)        # (C, K)
        num = jnp.sum(m * jnp.abs(pred_acc[...] - tgt))
        # Lane-dense per-batch partial numerator (value broadcast over lanes).
        num_ref[...] = jnp.zeros_like(num_ref) + num


def _pick_hw_tile(hw, max_tile=2048):
    """Largest 128-multiple divisor of hw that is <= max_tile (or hw itself)."""
    if hw <= max_tile:
        return hw
    for t in range(max_tile - max_tile % 128, 0, -128):
        if hw % t == 0:
            return t
    return hw


def reg_l1_loss(output, mask, ind, target, *, compute_dtype=jnp.bfloat16,
                hw_tile_max=2048):
    """output: (B, C, H, W); mask: (B, K); ind: (B, K); target: (B, K, C)."""
    B, C, H, W = output.shape
    K = ind.shape[1]
    HW = H * W
    hw_tile = _pick_hw_tile(HW, hw_tile_max)
    n_h = HW // hw_tile

    # Free reshape (no HBM relayout): keep channels on sublanes, HW on lanes.
    feat = output.reshape(B, C, HW)
    ind3 = ind.astype(jnp.int32).reshape(B, 1, K)
    mask_f = mask.astype(jnp.float32)
    mask3 = mask_f.reshape(B, 1, K)
    tgt_t = jnp.transpose(target.astype(jnp.float32), (0, 2, 1))   # (B, C, K), tiny

    num_part = pl.pallas_call(
        functools.partial(_regl1_kernel, compute_dtype=compute_dtype),
        out_shape=jax.ShapeDtypeStruct((B, 1, 128), jnp.float32),
        grid_spec=pltpu.PrefetchScalarGridSpec(
            num_scalar_prefetch=0,
            grid=(B, n_h),
            in_specs=[
                pl.BlockSpec((1, C, hw_tile), lambda b, h: (b, 0, h)),  # feat
                pl.BlockSpec((1, 1, K), lambda b, h: (b, 0, 0)),        # ind
                pl.BlockSpec((1, 1, K), lambda b, h: (b, 0, 0)),        # mask
                pl.BlockSpec((1, C, K), lambda b, h: (b, 0, 0)),        # target^T
            ],
            out_specs=pl.BlockSpec((1, 1, 128), lambda b, h: (b, 0, 0)),
            scratch_shapes=[pltpu.VMEM((C, K), jnp.float32)],           # pred acc
        ),
        compiler_params=pltpu.CompilerParams(
            dimension_semantics=("parallel", "arbitrary")),
    )(feat, ind3, mask3, tgt_t)

    num = jnp.sum(num_part[:, 0, 0])
    # Denominator = sum of the mask expanded over C channels (tiny; done in JAX).
    den = jnp.sum(mask_f) * jnp.float32(C)
    return num / (den + jnp.float32(1e-4))


def _reference_loss(output, mask, ind, target):
    """Pure-JAX reference matching the PyTorch module."""
    B, C, H, W = output.shape
    feat = jnp.transpose(output, (0, 2, 3, 1)).reshape(B, H * W, C)
    idx = jnp.broadcast_to(ind[..., None].astype(jnp.int32), (B, ind.shape[1], C))
    pred = jnp.take_along_axis(feat, idx, axis=1)
    m = jnp.broadcast_to(mask[..., None].astype(jnp.float32), pred.shape)
    num = jnp.sum(jnp.abs(pred * m - target * m))
    return num / (jnp.sum(m) + 1e-4)


if __name__ == "__main__":
    B, C, H, W, K = 2, 4, 16, 16, 8

    key = jax.random.PRNGKey(0)
    k1, k2, k3, k4 = jax.random.split(key, 4)
    output = jax.random.normal(k1, (B, C, H, W), dtype=jnp.float32)
    target = jax.random.normal(k2, (B, K, C), dtype=jnp.float32)
    ind = jax.random.randint(k3, (B, K), 0, H * W, dtype=jnp.int32)
    mask = jax.random.randint(k4, (B, K), 0, 2).astype(jnp.float32)

    ref = _reference_loss(output, mask, ind, target)

    # Exact path (f32 gather matmul): must match the reference tightly.
    loss_f32 = reg_l1_loss(output, mask, ind, target, compute_dtype=jnp.float32)
    jax.block_until_ready(loss_f32)
    assert jnp.allclose(loss_f32, ref, rtol=1e-5, atol=1e-6), (loss_f32, ref)

    # Default fast path (bf16 gather matmul): feat is rounded to bf16, so the
    # comparison tolerance is loosened accordingly (one-hot itself is exact).
    loss = reg_l1_loss(output, mask, ind, target)
    jax.block_until_ready(loss)
    assert jnp.allclose(loss, ref, rtol=2e-2, atol=1e-3), (loss, ref)

    print("KERNEL_OK")
</pallas_src>

<mosaic_0001>
module attributes {stable_mosaic.version = 11 : i64} {
  func.func @_regl1_kernel(%arg0: i32, %arg1: i32, %arg2: memref<1x4x256xf32, #tpu.memory_space<vmem>>, %arg3: memref<1x1x8xi32, #tpu.memory_space<vmem>>, %arg4: memref<1x1x8xf32, #tpu.memory_space<vmem>>, %arg5: memref<1x4x8xf32, #tpu.memory_space<vmem>>, %arg6: memref<1x1x128xf32, #tpu.memory_space<vmem>>, %arg7: memref<4x8xf32, #tpu.memory_space<vmem>>) attributes {dimension_semantics = [#tpu.dimension_semantics<parallel>, #tpu.dimension_semantics<arbitrary>], iteration_bounds = array<i64: 2, 1>, scalar_prefetch = 0 : i64, scratch_operands = 1 : i64, tpu.core_type = #tpu.core_type<tc>, window_params = [{transform_indices = @transform_0, window_bounds = array<i64: 1, 4, 256>}, {transform_indices = @transform_1, window_bounds = array<i64: 1, 1, 8>}, {transform_indices = @transform_2, window_bounds = array<i64: 1, 1, 8>}, {transform_indices = @transform_3, window_bounds = array<i64: 1, 4, 8>}, {transform_indices = @transform_4, window_bounds = array<i64: 1, 1, 128>}]} {
    %c0_i32 = arith.constant 0 : i32
    %0 = arith.cmpi eq, %arg1, %c0_i32 : i32
    %1 = arith.extui %0 : i1 to i32
    %c0_i32_0 = arith.constant 0 : i32
    %2 = arith.cmpi ne, %1, %c0_i32_0 : i32
    scf.if %2 {
      %cst_12 = arith.constant 0.000000e+00 : f32
      %22 = vector.broadcast %cst_12 : f32 to vector<4x8xf32>
      %c0_13 = arith.constant 0 : index
      %c0_14 = arith.constant 0 : index
      %23 = vector.load %arg7[%c0_13, %c0_14] : memref<4x8xf32, #tpu.memory_space<vmem>>, vector<4x8xf32>
      tpu.vector_store %arg7[%c0_13, %c0_14], %22 {strides = array<i32>} : memref<4x8xf32, #tpu.memory_space<vmem>>, vector<4x8xf32>,
    } else {
    }
    %c0 = arith.constant 0 : index
    %c0_1 = arith.constant 0 : index
    %c0_2 = arith.constant 0 : index
    %3 = vector.load %arg3[%c0, %c0_1, %c0_2] : memref<1x1x8xi32, #tpu.memory_space<vmem>>, vector<1x1x8xi32>
    %4 = vector.shape_cast %3 : vector<1x1x8xi32> to vector<1x8xi32>
    %c256_i32 = arith.constant 256 : i32
    %5 = arith.muli %arg1, %c256_i32 : i32
    %6 = vector.broadcast %5 : i32 to vector<1x8xi32>
    %7 = arith.subi %4, %6 : vector<1x8xi32>
    %8 = tpu.iota {dimensions = array<i32: 0>} : vector<256x8xi32>
    %9 = vector.broadcast %7 : vector<1x8xi32> to vector<256x8xi32>
    %10 = arith.cmpi eq, %8, %9 : vector<256x8xi32>
    %11 = arith.extui %10 : vector<256x8xi1> to vector<256x8xi32>
    %12 = arith.sitofp %11 : vector<256x8xi32> to vector<256x8xf32>
    %c0_3 = arith.constant 0 : index
    %c0_4 = arith.constant 0 : index
    %c0_5 = arith.constant 0 : index
    %13 = vector.load %arg2[%c0_3, %c0_4, %c0_5] : memref<1x4x256xf32, #tpu.memory_space<vmem>>, vector<1x4x256xf32>
    %14 = vector.shape_cast %13 : vector<1x4x256xf32> to vector<4x256xf32>
    %c0_6 = arith.constant 0 : index
    %c0_7 = arith.constant 0 : index
    %15 = vector.load %arg7[%c0_6, %c0_7] : memref<4x8xf32, #tpu.memory_space<vmem>>, vector<4x8xf32>
    %cst = arith.constant dense<0.000000e+00> : vector<4x8xf32>
    %16 = tpu.matmul %14, %12, %cst {dimension_numbers = #tpu.dot_dimension_numbers<[1], [0], [0], [1], [0, 0, 1, 1], [], []>} : vector<4x256xf32>, vector<256x8xf32>, vector<4x8xf32> -> vector<4x8xf32>
    %17 = arith.addf %15, %16 : vector<4x8xf32>
    %c0_8 = arith.constant 0 : index
    %c0_9 = arith.constant 0 : index
    %18 = vector.load %arg7[%c0_8, %c0_9] : memref<4x8xf32, #tpu.memory_space<vmem>>, vector<4x8xf32>
    tpu.vector_store %arg7[%c0_8, %c0_9], %17 {strides = array<i32>} : memref<4x8xf32, #tpu.memory_space<vmem>>, vector<4x8xf32>,
    %c0_i32_10 = arith.constant 0 : i32
    %19 = arith.cmpi eq, %arg1, %c0_i32_10 : i32
    %20 = arith.extui %19 : i1 to i32
    %c0_i32_11 = arith.constant 0 : i32
    %21 = arith.cmpi ne, %20, %c0_i32_11 : i32
    scf.if %21 {
      %c0_12 = arith.constant 0 : index
      %c0_13 = arith.constant 0 : index
      %c0_14 = arith.constant 0 : index
      %22 = vector.load %arg4[%c0_12, %c0_13, %c0_14] : memref<1x1x8xf32, #tpu.memory_space<vmem>>, vector<1x1x8xf32>
      %23 = vector.shape_cast %22 : vector<1x1x8xf32> to vector<1x8xf32>
      %c0_15 = arith.constant 0 : index
      %c0_16 = arith.constant 0 : index
      %c0_17 = arith.constant 0 : index
      %24 = vector.load %arg5[%c0_15, %c0_16, %c0_17] : memref<1x4x8xf32, #tpu.memory_space<vmem>>, vector<1x4x8xf32>
      %25 = vector.shape_cast %24 : vector<1x4x8xf32> to vector<4x8xf32>
      %c0_18 = arith.constant 0 : index
      %c0_19 = arith.constant 0 : index
      %26 = vector.load %arg7[%c0_18, %c0_19] : memref<4x8xf32, #tpu.memory_space<vmem>>, vector<4x8xf32>
      %27 = arith.subf %26, %25 : vector<4x8xf32>
      %28 = math.absf %27 : vector<4x8xf32>
      %29 = vector.broadcast %23 : vector<1x8xf32> to vector<4x8xf32>
      %30 = arith.mulf %29, %28 : vector<4x8xf32>
      %31 = vector.shape_cast %30 : vector<4x8xf32> to vector<1x4x8xf32>
      %cst_20 = arith.constant dense<0.000000e+00> : vector<1xf32>
      %32 = vector.multi_reduction <add>, %31, %cst_20 [1, 2] : vector<1x4x8xf32> to vector<1xf32>
      %33 = vector.shape_cast %32 : vector<1xf32> to vector<1x1x1xf32>
      %34 = vector.extract %33[0, 0, 0] : f32 from vector<1x1x1xf32>
      %cst_21 = arith.constant 0.000000e+00 : f32
      %35 = vector.broadcast %cst_21 : f32 to vector<1x1x128xf32>
      %36 = vector.broadcast %34 : f32 to vector<1x1x128xf32>
      %37 = arith.addf %35, %36 : vector<1x1x128xf32>
      %c0_22 = arith.constant 0 : index
      %c0_23 = arith.constant 0 : index
      %c0_24 = arith.constant 0 : index
      %38 = vector.load %arg6[%c0_22, %c0_23, %c0_24] : memref<1x1x128xf32, #tpu.memory_space<vmem>>, vector<1x1x128xf32>
      tpu.vector_store %arg6[%c0_22, %c0_23, %c0_24], %37 {strides = array<i32>} : memref<1x1x128xf32, #tpu.memory_space<vmem>>, vector<1x1x128xf32>,
    } else {
    }
    return
  }
  func.func @transform_0(%arg0: i32, %arg1: i32) -> (i32, i32, i32) {
    %c0_i32 = arith.constant 0 : i32
    %c0_i32_0 = arith.constant 0 : i32
    return %arg0, %c0_i32, %arg1 : i32, i32, i32
  }
  func.func @transform_1(%arg0: i32, %arg1: i32) -> (i32, i32, i32) {
    %c0_i32 = arith.constant 0 : i32
    %c0_i32_0 = arith.constant 0 : i32
    %c0_i32_1 = arith.constant 0 : i32
    return %arg0, %c0_i32, %c0_i32_0 : i32, i32, i32
  }
  func.func @transform_2(%arg0: i32, %arg1: i32) -> (i32, i32, i32) {
    %c0_i32 = arith.constant 0 : i32
    %c0_i32_0 = arith.constant 0 : i32
    %c0_i32_1 = arith.constant 0 : i32
    return %arg0, %c0_i32, %c0_i32_0 : i32, i32, i32
  }
  func.func @transform_3(%arg0: i32, %arg1: i32) -> (i32, i32, i32) {
    %c0_i32 = arith.constant 0 : i32
    %c0_i32_0 = arith.constant 0 : i32
    %c0_i32_1 = arith.constant 0 : i32
    return %arg0, %c0_i32, %c0_i32_0 : i32, i32, i32
  }
  func.func @transform_4(%arg0: i32, %arg1: i32) -> (i32, i32, i32) {
    %c0_i32 = arith.constant 0 : i32
    %c0_i32_0 = arith.constant 0 : i32
    %c0_i32_1 = arith.constant 0 : i32
    return %arg0, %c0_i32, %c0_i32_0 : i32, i32, i32
  }
}

</mosaic_0001>

<llo_original>
// kernel: tpu_custom_call.1
$region0: #{tpu_custom_call.1}
  #allocation0 [shape = 'u32[]', space=smem, size = 0x4, offset = 0x4, fixed_abs, tag = 'smem constant byte address 0x4 - core index']
  #allocation1 [shape = 'u32[144,128]{1,0:T(1,128)}', space=vmem, size = 0x12000, scoped, tag = 'internal scratch']
  #allocation2 [shape = 'f32[4,8]{1,0:T(4,128)}', space=vmem, size = 0x800, scoped, tag = 'scratch operand']
  %s0 = inlined_call_operand.hbm [shape: f32[2,4,256], index: 0, kind: input, shape index: {}]
  %s1 = inlined_call_operand.vmem [shape: s32[2,1,8], index: 1, kind: input, shape index: {}]
  %s2 = inlined_call_operand.hbm [shape: f32[2,1,8], index: 2, kind: input, shape index: {}]
  %s3 = inlined_call_operand.vmem [shape: f32[2,4,8], index: 3, kind: input, shape index: {}]
  %s4 = inlined_call_operand.hbm [shape: f32[2,1,128], index: 4, kind: output, shape index: {}]
  %s5 = sld [smem:[#allocation0]]
  $region65: #{tpu_custom_call.1} parent=0
    _
  %s7 = ssub.s32 1, %s5
  %s8 = scalar_select 0, %s7, %s5
  $region1: #{tpu_custom_call.1} parent=0
    #allocation3 [shape = 'u8[8192]{0}', space=vmem, size = 0x2000, scoped, tag = 'input window, operand 0']
    #allocation4 [shape = 's32[2]{0}', space=sflag, size = 0x8, scoped, tag = 'scoped memory for tpu_custom_call.1']
    #allocation5 [shape = 's32[2]{0}', space=sflag, size = 0x8, scoped, tag = 'scoped memory for tpu_custom_call.1']
    #allocation6 [shape = 'u8[1024]{0}', space=vmem, size = 0x400, scoped, tag = 'input window, operand 2']
    #allocation7 [shape = 's32[2]{0}', space=sflag, size = 0x8, scoped, tag = 'scoped memory for tpu_custom_call.1']
    #allocation8 [shape = 'u8[1024]{0}', space=vmem, size = 0x400, scoped, tag = 'output window, operand 0']
    %9 = vsyncpa [#allocation4], 0
    %s10 = scalar_lea.sflag [#allocation4], 1
    %11 = vsyncpa %s10, 0
    %12 = vsyncpa [#allocation7], 0
    %s13 = scalar_lea.sflag [#allocation7], 1
    %14 = vsyncpa %s13, 0
    %15 = vsyncpa [#allocation5], 0
    %s16 = scalar_lea.sflag [#allocation5], 1
    %17 = vsyncpa %s16, 0
    loop: start=0, step=1, limit=4
    $region2: #{tpu_custom_call.1} parent=1 // loop_pre_header
      _
    $region3: #{tpu_custom_call.1} parent=1 // loop_header
      %s19 = sphi 0, %s23
      %p20 = scmp.ge.s32.totalorder %s19, 4
      %s26 = sphi 0, %s38
      %s27 = sphi 0, %s34
      %s28 = sphi 0, %s26
      %s29 = sphi 0, %s27
      %s30 = sphi 0, %s28
      %s31 = sphi 0, %s29
      %s43 = sphi 0, %s45
      %s46 = sphi 0, %s43
      %s47 = sphi 0, %s46
      %s63 = sphi 0, %s47
      %s69 = sphi 0, %s71
      %s72 = sphi 0, %s69
      %s73 = sphi 0, %s72
      %s89 = sphi 0, %s73
      %s95 = sphi 0, %s97
      %s98 = sphi 0, %s95
      %s99 = sphi 0, %s98
      %s115 = sphi 0, %s99
      %s121 = sphi 0, %s123
      %s124 = sphi 0, %s121
      %s125 = sphi 0, %s124
      %s141 = sphi 0, %s125
      %s147 = sphi 0, %s149
      %s150 = sphi 0, %s147
      %s151 = sphi 0, %s150
      %s167 = sphi 0, %s151
    $region4: #{tpu_custom_call.1} parent=1 // loop_header_branch
      %22 = sbr.rel (%p20) target = $region8
    $region5: #{tpu_custom_call.1} parent=1 // loop_body
      %s24 = ssub.s32 %s19, 1
      %s25 = ssub.s32 %s19, 2
      %s32 = sadd.s32 1, %s27
      %p33 = scmp.ge.s32.totalorder %s32, 1
      %s34 = scalar_select %p33, 0, %s32
      %s35 = sadd.s32 1, %s26
      %s36 = scalar_select %p33, %s35, %s26
      %p37 = scmp.ge.s32.totalorder %s36, 2
      %s38 = scalar_select %p37, 0, %s36
      %s39 = ssub.s32 %s26, %s38
      %s40 = ssub.s32 %s27, %s34
      %s41 = sor.u32 %s39, %s40
      %p42 = scmp.eq.s32.totalorder %s41, 0
      %s44 = sadd.s32 %s43, 1
      %s45 = scalar_select %p42, %s43, %s44
      %p48 = pneg %p42
      %p49 = scmp.eq.s32.totalorder %s19, 1
      %p50 = por %p48, %p49
      %p51 = scmp.ne.s32.totalorder %s43, %s46
      %p52 = scmp.eq.s32.totalorder %s19, 0
      %p53 = por %p51, %p52
      %p54 = scmp.ne.s32.totalorder %s43, %s46
      %p55 = scmp.eq.s32.totalorder %s24, 1
      %p56 = por %p54, %p55
      %p57 = scmp.ne.s32.totalorder %s46, %s47
      %p58 = scmp.eq.s32.totalorder %s24, 0
      %p59 = por %p57, %p58
      %p60 = scmp.ne.s32.totalorder %s46, %s47
      %p61 = scmp.eq.s32.totalorder %s25, 1
      %p62 = por %p60, %p61
      %p64 = scmp.ne.s32.totalorder %s47, %s63
      %p65 = scmp.eq.s32.totalorder %s25, 0
      %p66 = por %p64, %p65
      %s67 = ssub.s32 %s26, %s38
      %p68 = scmp.eq.s32.totalorder %s67, 0
      %s70 = sadd.s32 %s69, 1
      %s71 = scalar_select %p68, %s69, %s70
      %p74 = pneg %p68
      %p75 = scmp.eq.s32.totalorder %s19, 1
      %p76 = por %p74, %p75
      %p77 = scmp.ne.s32.totalorder %s69, %s72
      %p78 = scmp.eq.s32.totalorder %s19, 0
      %p79 = por %p77, %p78
      %p80 = scmp.ne.s32.totalorder %s69, %s72
      %p81 = scmp.eq.s32.totalorder %s24, 1
      %p82 = por %p80, %p81
      %p83 = scmp.ne.s32.totalorder %s72, %s73
      %p84 = scmp.eq.s32.totalorder %s24, 0
      %p85 = por %p83, %p84
      %p86 = scmp.ne.s32.totalorder %s72, %s73
      %p87 = scmp.eq.s32.totalorder %s25, 1
      %p88 = por %p86, %p87
      %p90 = scmp.ne.s32.totalorder %s73, %s89
      %p91 = scmp.eq.s32.totalorder %s25, 0
      %p92 = por %p90, %p91
      %s93 = ssub.s32 %s26, %s38
      %p94 = scmp.eq.s32.totalorder %s93, 0
      %s96 = sadd.s32 %s95, 1
      %s97 = scalar_select %p94, %s95, %s96
      %p100 = pneg %p94
      %p101 = scmp.eq.s32.totalorder %s19, 1
      %p102 = por %p100, %p101
      %p103 = scmp.ne.s32.totalorder %s95, %s98
      %p104 = scmp.eq.s32.totalorder %s19, 0
      %p105 = por %p103, %p104
      %p106 = scmp.ne.s32.totalorder %s95, %s98
      %p107 = scmp.eq.s32.totalorder %s24, 1
      %p108 = por %p106, %p107
      %p109 = scmp.ne.s32.totalorder %s98, %s99
      %p110 = scmp.eq.s32.totalorder %s24, 0
      %p111 = por %p109, %p110
      %p112 = scmp.ne.s32.totalorder %s98, %s99
      %p113 = scmp.eq.s32.totalorder %s25, 1
      %p114 = por %p112, %p113
      %p116 = scmp.ne.s32.totalorder %s99, %s115
      %p117 = scmp.eq.s32.totalorder %s25, 0
      %p118 = por %p116, %p117
      %s119 = ssub.s32 %s26, %s38
      %p120 = scmp.eq.s32.totalorder %s119, 0
      %s122 = sadd.s32 %s121, 1
      %s123 = scalar_select %p120, %s121, %s122
      %p126 = pneg %p120
      %p127 = scmp.eq.s32.totalorder %s19, 1
      %p128 = por %p126, %p127
      %p129 = scmp.ne.s32.totalorder %s121, %s124
      %p130 = scmp.eq.s32.totalorder %s19, 0
      %p131 = por %p129, %p130
      %p132 = scmp.ne.s32.totalorder %s121, %s124
      %p133 = scmp.eq.s32.totalorder %s24, 1
      %p134 = por %p132, %p133
      %p135 = scmp.ne.s32.totalorder %s124, %s125
      %p136 = scmp.eq.s32.totalorder %s24, 0
      %p137 = por %p135, %p136
      %p138 = scmp.ne.s32.totalorder %s124, %s125
      %p139 = scmp.eq.s32.totalorder %s25, 1
      %p140 = por %p138, %p139
      %p142 = scmp.ne.s32.totalorder %s125, %s141
      %p143 = scmp.eq.s32.totalorder %s25, 0
      %p144 = por %p142, %p143
      %s145 = ssub.s32 %s26, %s38
      %p146 = scmp.eq.s32.totalorder %s145, 0
      %s148 = sadd.s32 %s147, 1
      %s149 = scalar_select %p146, %s147, %s148
      %p152 = pneg %p146
      %p153 = scmp.eq.s32.totalorder %s19, 1
      %p154 = por %p152, %p153
      %p155 = scmp.ne.s32.totalorder %s147, %s150
      %p156 = scmp.eq.s32.totalorder %s19, 0
      %p157 = por %p155, %p156
      %p158 = scmp.ne.s32.totalorder %s147, %s150
      %p159 = scmp.eq.s32.totalorder %s24, 1
      %p160 = por %p158, %p159
      %p161 = scmp.ne.s32.totalorder %s150, %s151
      %p162 = scmp.eq.s32.totalorder %s24, 0
      %p163 = por %p161, %p162
      %p164 = scmp.ne.s32.totalorder %s150, %s151
      %p165 = scmp.eq.s32.totalorder %s25, 1
      %p166 = por %p164, %p165
      %p168 = scmp.ne.s32.totalorder %s151, %s167
      %p169 = scmp.eq.s32.totalorder %s25, 0
      %p170 = por %p168, %p169
      %p171 = scmp.le.s32.totalorder 1, %s19
      %p172 = scmp.lt.s32.totalorder %s19, 3
      %p173 = pnand %p171, %p172
      %p174 = pneg %p173
      // Predicated region
      $region9: #{tpu_custom_call.1} parent=5 // pred_check
        _
      $region10: #{tpu_custom_call.1} parent=5 // pred_check_branch
        %176 = sbr.rel (%p173) target = $region12
      $region11: #{tpu_custom_call.1} parent=5 // pred_region
        %s177 = ssub.s32 %s19, 1
      $region12: #{tpu_custom_call.1} parent=5 // pred_fallthru
        _
      %p178 = scmp.lt.s32.totalorder %s19, 2
      // Predicated region
      $region13: #{tpu_custom_call.1} parent=5 // pred_check
        %p179 = pneg %p178
      $region14: #{tpu_custom_call.1} parent=5 // pred_check_branch
        %181 = sbr.rel (%p179) target = $region16
      $region15: #{tpu_custom_call.1} parent=5 // pred_region
        // Predicated region
        $region17: #{tpu_custom_call.1} parent=15 // pred_check
          %p182 = pneg %p53
        $region18: #{tpu_custom_call.1} parent=15 // pred_check_branch
          %184 = sbr.rel (%p182) target = $region20
        $region19: #{tpu_custom_call.1} parent=15 // pred_region
          %s185 = sand.u32 %s43, 1
          %s186 = scalar_lea.sflag [#allocation4], %s185
          %s187 = sand.u32 %s43, 1
          %s188 = smul.addr %s187, 8
          %s189 = scalar_lea.vmem [#allocation3], %s188
          %s190 = smul.u32 2, %s27
          %s192 = ssub.s32 128, 128
          %193 = vsyncadd %s186, %s192
          %s194 = smul.addr %s26, 2
          %s195 = sadd.s32 %s190, %s194
          %s196 = smul.addr %s195, 64
          %s197 = scalar_lea.hbm %s0, %s196
          %s199 = sshll.u32 %s189, 4
          %s200 = int_to_ptr.vmem [resolvable:$true] %s199
          %202 = dma.hbm_to_vmem [thread:$0]  %s197, 128, %s200, %s186
        $region20: #{tpu_custom_call.1} parent=15 // pred_fallthru
          _
        // Predicated region
        $region21: #{tpu_custom_call.1} parent=15 // pred_check
          %p203 = pneg %p79
        $region22: #{tpu_custom_call.1} parent=15 // pred_check_branch
          %205 = sbr.rel (%p203) target = $region24
        $region23: #{tpu_custom_call.1} parent=15 // pred_region
          %p206 = scmp.lt.s32.totalorder %s26, 1
          %s207 = scalar_select %p206, %s26, 1
          %s208 = scalar_lea.vmem %s1, %s207
        $region24: #{tpu_custom_call.1} parent=15 // pred_fallthru
          _
        // Predicated region
        $region25: #{tpu_custom_call.1} parent=15 // pred_check
          %p209 = pneg %p105
        $region26: #{tpu_custom_call.1} parent=15 // pred_check_branch
          %211 = sbr.rel (%p209) target = $region28
        $region27: #{tpu_custom_call.1} parent=15 // pred_region
          %s212 = sand.u32 %s95, 1
          %s213 = scalar_lea.sflag [#allocation7], %s212
          %s214 = sand.u32 %s95, 1
          %s215 = scalar_lea.vmem [#allocation6], %s214
          %s217 = ssub.s32 16, 16
          %218 = vsyncadd %s213, %s217
          %s219 = smul.addr %s26, 16
          %s220 = scalar_lea.hbm %s2, %s219
          %s222 = sshll.u32 %s215, 4
          %s223 = int_to_ptr.vmem [resolvable:$true] %s222
          %225 = dma.hbm_to_vmem [thread:$0]  %s220, 16, %s223, %s213
        $region28: #{tpu_custom_call.1} parent=15 // pred_fallthru
          _
        // Predicated region
        $region29: #{tpu_custom_call.1} parent=15 // pred_check
          %p226 = pneg %p131
        $region30: #{tpu_custom_call.1} parent=15 // pred_check_branch
          %228 = sbr.rel (%p226) target = $region32
        $region31: #{tpu_custom_call.1} parent=15 // pred_region
          %p229 = scmp.lt.s32.totalorder %s26, 1
          %s230 = scalar_select %p229, %s26, 1
          %s231 = smul.addr %s230, 4
          %s232 = scalar_lea.vmem %s3, %s231
        $region32: #{tpu_custom_call.1} parent=15 // pred_fallthru
          _
      $region16: #{tpu_custom_call.1} parent=5 // pred_fallthru
        _
      %p233 = scmp.le.s32.totalorder 1, %s19
      %p234 = scmp.lt.s32.totalorder %s19, 3
      %p235 = pnand %p233, %p234
      %p236 = pneg %p235
      // Predicated region
      $region33: #{tpu_custom_call.1} parent=5 // pred_check
        _
      $region34: #{tpu_custom_call.1} parent=5 // pred_check_branch
        %238 = sbr.rel (%p235) target = $region36
      $region35: #{tpu_custom_call.1} parent=5 // pred_region
        %s239 = ssub.s32 %s19, 1
        %s240 = sand.u32 %s46, 1
        %s241 = scalar_lea.sflag [#allocation4], %s240
        %s242 = sand.u32 %s46, 1
        %s243 = smul.addr %s242, 8
        %s244 = scalar_lea.vmem [#allocation3], %s243
        // Predicated region
        $region37: #{tpu_custom_call.1} parent=35 // pred_check
          %p245 = pneg %p59
        $region38: #{tpu_custom_call.1} parent=35 // pred_check_branch
          %247 = sbr.rel (%p245) target = $region40
        $region39: #{tpu_custom_call.1} parent=35 // pred_region
          %248 = dma.done %s241, 128
        $region40: #{tpu_custom_call.1} parent=35 // pred_fallthru
          _
        %s249 = sand.u32 %s98, 1
        %s250 = scalar_lea.sflag [#allocation7], %s249
        %s251 = sand.u32 %s98, 1
        %s252 = scalar_lea.vmem [#allocation6], %s251
        // Predicated region
        $region41: #{tpu_custom_call.1} parent=35 // pred_check
          %p253 = pneg %p111
        $region42: #{tpu_custom_call.1} parent=35 // pred_check_branch
          %255 = sbr.rel (%p253) target = $region44
        $region43: #{tpu_custom_call.1} parent=35 // pred_region
          %256 = dma.done %s250, 16
        $region44: #{tpu_custom_call.1} parent=35 // pred_fallthru
          _
        %s257 = sand.u32 %s46, 1
        %s258 = scalar_lea.sflag [#allocation4], %s257
        %s259 = sand.u32 %s46, 1
        %s260 = smul.addr %s259, 8
        %s261 = scalar_lea.vmem [#allocation3], %s260
        %p262 = pneg %p59
        %p263 = pneg %p56
        %p264 = scmp.lt.s32.totalorder %s28, 1
        %s265 = scalar_select %p264, %s28, 1
        %s266 = scalar_lea.vmem %s1, %s265
        %p267 = pneg %p85
        %p268 = pneg %p82
        %s269 = sand.u32 %s98, 1
        %s270 = scalar_lea.sflag [#allocation7], %s269
        %s271 = sand.u32 %s98, 1
        %s272 = scalar_lea.vmem [#allocation6], %s271
        %p273 = pneg %p111
        %p274 = pneg %p108
        %p275 = scmp.lt.s32.totalorder %s28, 1
        %s276 = scalar_select %p275, %s28, 1
        %s277 = smul.addr %s276, 4
        %s278 = scalar_lea.vmem %s3, %s277
        %p279 = pneg %p137
        %p280 = pneg %p134
        %p281 = pneg %p163
        %p282 = pneg %p160
        %s283 = sand.u32 %s150, 1
        %s284 = scalar_lea.sflag [#allocation5], %s283
        %s285 = sand.u32 %s150, 1
        %s286 = scalar_lea.vmem [#allocation8], %s285
        %s287 = smul.u32 2, %s29
        %p288 = scmp.lt.s32.totalorder %s28, 1
        %s289 = scalar_select %p288, %s28, 1
        %s290 = scalar_lea.vmem %s1, %s289
        %p291 = scmp.lt.s32.totalorder %s28, 1
        %s292 = scalar_select %p291, %s28, 1
        %s293 = smul.addr %s292, 4
        %s294 = scalar_lea.vmem %s3, %s293
        %p295 = scmp.eq.s32.totalorder %s29, 0
        // Predicated region
        $region45: #{tpu_custom_call.1} parent=35 // pred_check
          %p296 = pneg %p295
        $region46: #{tpu_custom_call.1} parent=35 // pred_check_branch
          %298 = sbr.rel (%p296) target = $region48
        $region47: #{tpu_custom_call.1} parent=35 // pred_region
          %vm299 = vcmask 60416
          %300 = vst.msk [vmem:[#allocation2] sm:$0xf] %vm299, 0.0
        $region48: #{tpu_custom_call.1} parent=35 // pred_fallthru
          _
        %v301 = vld [vmem:[%s290] sm:$0x1]
        %s302 = smul.u32 %s29, 256
        %v303 = vstv %s302
        %v304 = vsub.s32 %v301, %v303
        %v305 = vlaneseq
        %v306 = vshrl.u32 %v305, 7
        %v307 = vadd.s32 %v306, 8
        %v308 = vadd.s32 %v306, 16
        %v309 = vadd.s32 %v306, 24
        %v310 = vadd.s32 %v306, 32
        %v311 = vadd.s32 %v306, 40
        %v312 = vadd.s32 %v306, 48
        %v313 = vadd.s32 %v306, 56
        %v314 = vadd.s32 %v306, 64
        %v315 = vadd.s32 %v306, 72
        %v316 = vadd.s32 %v306, 80
        %v317 = vadd.s32 %v306, 88
        %v318 = vadd.s32 %v306, 96
        %v319 = vadd.s32 %v306, 104
        %v320 = vadd.s32 %v306, 112
        %v321 = vadd.s32 %v306, 120
        %v322 = vadd.s32 %v306, 128
        %v323 = vadd.s32 %v306, 136
        %v324 = vadd.s32 %v306, 144
        %v325 = vadd.s32 %v306, 152
        %v326 = vadd.s32 %v306, 160
        %v327 = vadd.s32 %v306, 168
        %v328 = vadd.s32 %v306, 176
        %v329 = vadd.s32 %v306, 184
        %v330 = vadd.s32 %v306, 192
        %v331 = vadd.s32 %v306, 200
        %v332 = vadd.s32 %v306, 208
        %v333 = vadd.s32 %v306, 216
        %v334 = vadd.s32 %v306, 224
        %v335 = vadd.s32 %v306, 232
        %v336 = vadd.s32 %v306, 240
        %v337 = vadd.s32 %v306, 248
        %v338 = vlaneseq
        %v339 = vshrl.u32 %v338, 7
        %v340 = vsub.s32 0, %v339
        %v341 = vrot.slane %v304, %v340
        %vm342 = vcmp.eq.s32.totalorder %v306, %v341
        %vm343 = vcmp.eq.s32.totalorder %v307, %v341
        %vm344 = vcmp.eq.s32.totalorder %v308, %v341
        %vm345 = vcmp.eq.s32.totalorder %v309, %v341
        %vm346 = vcmp.eq.s32.totalorder %v310, %v341
        %vm347 = vcmp.eq.s32.totalorder %v311, %v341
        %vm348 = vcmp.eq.s32.totalorder %v312, %v341
        %vm349 = vcmp.eq.s32.totalorder %v313, %v341
        %vm350 = vcmp.eq.s32.totalorder %v314, %v341
        %vm351 = vcmp.eq.s32.totalorder %v315, %v341
        %vm352 = vcmp.eq.s32.totalorder %v316, %v341
        %vm353 = vcmp.eq.s32.totalorder %v317, %v341
        %vm354 = vcmp.eq.s32.totalorder %v318, %v341
        %vm355 = vcmp.eq.s32.totalorder %v319, %v341
        %vm356 = vcmp.eq.s32.totalorder %v320, %v341
        %vm357 = vcmp.eq.s32.totalorder %v321, %v341
        %vm358 = vcmp.eq.s32.totalorder %v322, %v341
        %vm359 = vcmp.eq.s32.totalorder %v323, %v341
        %vm360 = vcmp.eq.s32.totalorder %v324, %v341
        %vm361 = vcmp.eq.s32.totalorder %v325, %v341
        %vm362 = vcmp.eq.s32.totalorder %v326, %v341
        %vm363 = vcmp.eq.s32.totalorder %v327, %v341
        %vm364 = vcmp.eq.s32.totalorder %v328, %v341
        %vm365 = vcmp.eq.s32.totalorder %v329, %v341
        %vm366 = vcmp.eq.s32.totalorder %v330, %v341
        %vm367 = vcmp.eq.s32.totalorder %v331, %v341
        %vm368 = vcmp.eq.s32.totalorder %v332, %v341
        %vm369 = vcmp.eq.s32.totalorder %v333, %v341
        %vm370 = vcmp.eq.s32.totalorder %v334, %v341
        %vm371 = vcmp.eq.s32.totalorder %v335, %v341
        %vm372 = vcmp.eq.s32.totalorder %v336, %v341
        %vm373 = vcmp.eq.s32.totalorder %v337, %v341
        %v374 = vsel %vm342, 1, 0
        %v375 = vsel %vm343, 1, 0
        %v376 = vsel %vm344, 1, 0
        %v377 = vsel %vm345, 1, 0
        %v378 = vsel %vm346, 1, 0
        %v379 = vsel %vm347, 1, 0
        %v380 = vsel %vm348, 1, 0
        %v381 = vsel %vm349, 1, 0
        %v382 = vsel %vm350, 1, 0
        %v383 = vsel %vm351, 1, 0
        %v384 = vsel %vm352, 1, 0
        %v385 = vsel %vm353, 1, 0
        %v386 = vsel %vm354, 1, 0
        %v387 = vsel %vm355, 1, 0
        %v388 = vsel %vm356, 1, 0
        %v389 = vsel %vm357, 1, 0
        %v390 = vsel %vm358, 1, 0
        %v391 = vsel %vm359, 1, 0
        %v392 = vsel %vm360, 1, 0
        %v393 = vsel %vm361, 1, 0
        %v394 = vsel %vm362, 1, 0
        %v395 = vsel %vm363, 1, 0
        %v396 = vsel %vm364, 1, 0
        %v397 = vsel %vm365, 1, 0
        %v398 = vsel %vm366, 1, 0
        %v399 = vsel %vm367, 1, 0
        %v400 = vsel %vm368, 1, 0
        %v401 = vsel %vm369, 1, 0
        %v402 = vsel %vm370, 1, 0
        %v403 = vsel %vm371, 1, 0
        %v404 = vsel %vm372, 1, 0
        %v405 = vsel %vm373, 1, 0
        %v406 = vcvt.s32.f32 %v374
        %v407 = vcvt.s32.f32 %v375
        %v408 = vcvt.s32.f32 %v376
        %v409 = vcvt.s32.f32 %v377
        %v410 = vcvt.s32.f32 %v378
        %v411 = vcvt.s32.f32 %v379
        %v412 = vcvt.s32.f32 %v380
        %v413 = vcvt.s32.f32 %v381
        %v414 = vcvt.s32.f32 %v382
        %v415 = vcvt.s32.f32 %v383
        %v416 = vcvt.s32.f32 %v384
        %v417 = vcvt.s32.f32 %v385
        %v418 = vcvt.s32.f32 %v386
        %v419 = vcvt.s32.f32 %v387
        %v420 = vcvt.s32.f32 %v388
        %v421 = vcvt.s32.f32 %v389
        %v422 = vcvt.s32.f32 %v390
        %v423 = vcvt.s32.f32 %v391
        %v424 = vcvt.s32.f32 %v392
        %v425 = vcvt.s32.f32 %v393
        %v426 = vcvt.s32.f32 %v394
        %v427 = vcvt.s32.f32 %v395
        %v428 = vcvt.s32.f32 %v396
        %v429 = vcvt.s32.f32 %v397
        %v430 = vcvt.s32.f32 %v398
        %v431 = vcvt.s32.f32 %v399
        %v432 = vcvt.s32.f32 %v400
        %v433 = vcvt.s32.f32 %v401
        %v434 = vcvt.s32.f32 %v402
        %v435 = vcvt.s32.f32 %v403
        %v436 = vcvt.s32.f32 %v404
        %v437 = vcvt.s32.f32 %v405
        %v438 = vld [vmem:[%s244] sm:$0xff]
        %v439 = vld [vmem:[#allocation2] sm:$0xf]
        %v441 = vcombine.high %v438, %v438
        %443 = vmatprep.subr.mxu0 0.0
        %444 = vmatpush1.msra.mxu0 %v406
        %445 = vmatprep.subr.mxu0 0.0
        %446 = vmatpush1.msra.mxu0 %v407
        %447 = vmatprep.subr.mxu0 0.0
        %448 = vmatpush1.msra.mxu0 %v408
        %449 = vmatprep.subr.mxu0 0.0
        %450 = vmatpush1.msra.mxu0 %v409
        %451 = vmatprep.subr.mxu0 0.0
        %452 = vmatpush1.msra.mxu0 %v410
        %453 = vmatprep.subr.mxu0 0.0
        %454 = vmatpush1.msra.mxu0 %v411
        %455 = vmatprep.subr.mxu0 0.0
        %456 = vmatpush1.msra.mxu0 %v412
        %457 = vmatprep.subr.mxu0 0.0
        %458 = vmatpush1.msra.mxu0 %v413
        %459 = vmatprep.subr.mxu0 0.0
        %460 = vmatpush1.msra.mxu0 %v414
        %461 = vmatprep.subr.mxu0 0.0
        %462 = vmatpush1.msra.mxu0 %v415
        %463 = vmatprep.subr.mxu0 0.0
        %464 = vmatpush1.msra.mxu0 %v416
        %465 = vmatprep.subr.mxu0 0.0
        %466 = vmatpush1.msra.mxu0 %v417
        %467 = vmatprep.subr.mxu0 0.0
        %468 = vmatpush1.msra.mxu0 %v418
        %469 = vmatprep.subr.mxu0 0.0
        %470 = vmatpush1.msra.mxu0 %v419
        %471 = vmatprep.subr.mxu0 0.0
        %472 = vmatpush1.msra.mxu0 %v420
        %473 = vmatprep.subr.mxu0 0.0
        %474 = vmatpush1.msra.mxu0 %v421
        %475 = vmatprep.subr.mxu0 0.0
        %476 = vmatpush1.msra.mxu0 %v422
        %477 = vmatprep.subr.mxu0 0.0
        %478 = vmatpush1.msra.mxu0 %v423
        %479 = vmatprep.subr.mxu0 0.0
        %480 = vmatpush1.msra.mxu0 %v424
        %481 = vmatprep.subr.mxu0 0.0
        %482 = vmatpush1.msra.mxu0 %v425
        %483 = vmatprep.subr.mxu0 0.0
        %484 = vmatpush1.msra.mxu0 %v426
        %485 = vmatprep.subr.mxu0 0.0
        %486 = vmatpush1.msra.mxu0 %v427
        %487 = vmatprep.subr.mxu0 0.0
        %488 = vmatpush1.msra.mxu0 %v428
        %489 = vmatprep.subr.mxu0 0.0
        %490 = vmatpush1.msra.mxu0 %v429
        %491 = vmatprep.subr.mxu0 0.0
        %492 = vmatpush1.msra.mxu0 %v430
        %493 = vmatprep.subr.mxu0 0.0
        %494 = vmatpush1.msra.mxu0 %v431
        %495 = vmatprep.subr.mxu0 0.0
        %496 = vmatpush1.msra.mxu0 %v432
        %497 = vmatprep.subr.mxu0 0.0
        %498 = vmatpush1.msra.mxu0 %v433
        %499 = vmatprep.subr.mxu0 0.0
        %500 = vmatpush1.msra.mxu0 %v434
        %501 = vmatprep.subr.mxu0 0.0
        %502 = vmatpush1.msra.mxu0 %v435
        %503 = vmatprep.subr.mxu0 0.0
        %504 = vmatpush1.msra.mxu0 %v436
        %505 = vmatprep.subr.mxu0 0.0
        %506 = vmatpush1.msra.mxu0 %v437
        %507 = vmatprep.mubr.f32.mxu0 %v441
        %508 = vmatmul.mubr.f32.gmra.mrb[0].mxu0 %v438
        %v509 = vpop.f32.mrb[0].mxu0
        %v510 = vadd.f32 0.0, %v509
        %v511 = vpop.f32.mrb[0].mxu0
        %512 = vdwg.mxu0
        %v513 = vadd.f32 %v439, %v510
        %vm514 = vcmask 60416
        %515 = vst.msk [vmem:[#allocation2] sm:$0xf] %vm514, %v513
        // Predicated region
        $region49: #{tpu_custom_call.1} parent=35 // pred_check
          %p516 = pneg %p295
        $region50: #{tpu_custom_call.1} parent=35 // pred_check_branch
          %518 = sbr.rel (%p516) target = $region52
        $region51: #{tpu_custom_call.1} parent=35 // pred_region
          %v519 = vld [vmem:[%s252] sm:$0x1]
          %v520 = vld [vmem:[%s294] sm:$0xf]
          %v521 = vld [vmem:[#allocation2] sm:$0xf]
          %v522 = vsub.f32 %v521, %v520
          %v523 = vand.u32 2147483647, %v522
          %v525 = vlaneseq
          %v526 = vshrl.u32 %v525, 7
          %v527 = vsub.s32 0, %v526
          %v528 = vrot.slane %v519, %v527
          %v530 = vmul.f32 %v528, %v523
          %v531 = vsel %vm514, %v530, 0.0
          %532 = vadd.xlane.f32.xlu0 %v531
          %v533 = vpop.xlane.xlu0 %532
          %v534 = vrot.slane %v533, 4
          %v535 = vadd.f32 %v533, %v534
          %v536 = vrot.slane %v535, 2
          %v537 = vadd.f32 %v535, %v536
          %v538 = vrot.slane %v537, 1
          %v539 = vadd.f32 %v537, %v538
          %s540 = vtos %v539
          %v541 = vstv %s540
          %v542 = vadd.f32 %v541, 0.0
          %543 = vst [vmem:[%s286] sm:$0x1] %v542
        $region52: #{tpu_custom_call.1} parent=35 // pred_fallthru
          _
        %s544 = sand.u32 %s150, 1
        %s545 = scalar_lea.sflag [#allocation5], %s544
        %s546 = sand.u32 %s150, 1
        %s547 = scalar_lea.vmem [#allocation8], %s546
        // Predicated region
        $region53: #{tpu_custom_call.1} parent=35 // pred_check
          %p548 = pneg %p160
        $region54: #{tpu_custom_call.1} parent=35 // pred_check_branch
          %550 = sbr.rel (%p548) target = $region56
        $region55: #{tpu_custom_call.1} parent=35 // pred_region
          %s552 = ssub.s32 16, 16
          %553 = vsyncadd %s545, %s552
          %s554 = smul.addr %s28, 16
          %s555 = scalar_lea.hbm %s4, %s554
          %s557 = sshll.u32 %s547, 4
          %s558 = int_to_ptr.vmem [resolvable:$true] %s557
          %560 = dma.vmem_to_hbm [thread:$0]  %s558, 16, %s555, %s545
        $region56: #{tpu_custom_call.1} parent=35 // pred_fallthru
          _
      $region36: #{tpu_custom_call.1} parent=5 // pred_fallthru
        _
      %p561 = scmp.le.s32.totalorder 2, %s19
      // Predicated region
      $region57: #{tpu_custom_call.1} parent=5 // pred_check
        %p562 = pneg %p561
      $region58: #{tpu_custom_call.1} parent=5 // pred_check_branch
        %564 = sbr.rel (%p562) target = $region60
      $region59: #{tpu_custom_call.1} parent=5 // pred_region
        %s565 = ssub.s32 %s19, 2
        // Predicated region
        $region61: #{tpu_custom_call.1} parent=59 // pred_check
          %p566 = pneg %p166
        $region62: #{tpu_custom_call.1} parent=59 // pred_check_branch
          %568 = sbr.rel (%p566) target = $region64
        $region63: #{tpu_custom_call.1} parent=59 // pred_region
          %s569 = sand.u32 %s151, 1
          %s570 = scalar_lea.sflag [#allocation5], %s569
          %s571 = sand.u32 %s151, 1
          %s572 = scalar_lea.vmem [#allocation8], %s571
          %573 = dma.done %s570, 16
        $region64: #{tpu_custom_call.1} parent=59 // pred_fallthru
          _
      $region60: #{tpu_custom_call.1} parent=5 // pred_fallthru
        _
    $region6: #{tpu_custom_call.1} parent=1 // loop_footer
      %s23 = sadd.s32 1, %s19
    $region7: #{tpu_custom_call.1} parent=1 // loop_footer_branch
      %18 = sbr.rel target = $region3
    $region8: #{tpu_custom_call.1} parent=1 // loop_exit
      _
    %574 = vsyncpa [#allocation4], 1
    %s575 = scalar_lea.sflag [#allocation4], 1
    %576 = vsyncpa %s575, 1
    %577 = vsyncpa [#allocation7], 1
    %s578 = scalar_lea.sflag [#allocation7], 1
    %579 = vsyncpa %s578, 1
    %580 = vsyncpa [#allocation5], 1
    %s581 = scalar_lea.sflag [#allocation5], 1
    %582 = vsyncpa %s581, 1

</llo_original>
